<compile_context>
chip_gen: v7x
topology: tpu7x:2x2x1
jax: 0.10.0
libtpu: 0.0.40
codegen_flags: <defaults>
</compile_context>

<pallas_src>
import math
import jax
import jax.numpy as jnp
from jax import lax
from jax.experimental import pallas as pl
from jax.experimental.pallas import tpu as pltpu


DEFAULT_SIZES = [128] * 10   # module default: 9 x [Linear(128,128) + ReLU]


def _round_up(x, m):
    return ((x + m - 1) // m) * m


def mlp_kernel(x_ref, w_ref, b_ref, o_ref):
    """Fused MLP for one batch tile: h_{l+1} = act_dtype(relu(h_l @ W_l + b_l)).

    x_ref: (TILE_B, D) f32 VMEM          -- activations for this grid step
    w_ref: (L, D, D)  bf16 VMEM          -- weights, pre-transposed [in, out], resident
    b_ref: (L, 1, D)  f32|bf16 VMEM      -- biases, resident; dtype selects epilogue
    o_ref: (TILE_B, D) f32 VMEM
    """
    num_layers = w_ref.shape[0]
    # Epilogue precision is chosen by the bias dtype (set in prepare_params):
    #   bf16 biases -> bf16 bias-add/ReLU + bf16 carry   (v6e/v7x: bf16 VPU)
    #   f32  biases -> f32 epilogue                      (v5e: f32-only VPU)
    compute_dtype = b_ref.dtype

    def body(l, h):
        # bf16 operands on the MXU, f32 accumulation.
        z = jnp.dot(h.astype(jnp.bfloat16), w_ref[l],
                    preferred_element_type=jnp.float32)
        z = z.astype(compute_dtype) + b_ref[l]
        return jnp.maximum(z, 0.0)                     # ReLU

    h0 = x_ref[...].astype(compute_dtype)
    h = lax.fori_loop(0, num_layers, body, h0, unroll=True)
    o_ref[...] = h.astype(o_ref.dtype)


def _vpu_has_bf16():
    """True on TPU generations with a native-bf16 VPU (v6e / v7x)."""
    try:
        kind = jax.devices()[0].device_kind.lower()
    except Exception:
        return False
    return ("v6" in kind) or ("v7" in kind)


def prepare_params(w_stack, b_stack, *, bf16_epilogue=None):
    """One-time (hoisted) parameter casts.

    w_stack: (L, D, D) f32 stored as [in, out]  -> bf16 MXU operands
    b_stack: (L, 1, D) f32                      -> bf16 on v6e/v7x, else f32
    """
    if bf16_epilogue is None:
        bf16_epilogue = _vpu_has_bf16()
    w_bf16 = w_stack.astype(jnp.bfloat16)
    b_cast = b_stack.astype(jnp.bfloat16 if bf16_epilogue else jnp.float32)
    return w_bf16, b_cast


def mlp_forward(x, w_bf16, b_cast, *, tile_b=1024):
    """x: (B, D) f32; w_bf16: (L, D, D) bf16 [in, out]; b_cast: (L, 1, D) f32|bf16."""
    B, D = x.shape
    L = w_bf16.shape[0]

    # Adaptive batch tile: large enough to amortize per-grid-step overhead, but
    # never (much) larger than the batch itself. Always a multiple of 8 so the
    # (8, 128) sublane/lane constraint holds; edge blocks are masked by Pallas.
    tile = min(tile_b, max(8, _round_up(B, 8)))
    n_tiles = pl.cdiv(B, tile)

    cost = pl.CostEstimate(
        flops=2 * L * B * D * D,
        transcendentals=0,
        bytes_accessed=(x.size * 4 + B * D * 4
                        + w_bf16.size * 2 + b_cast.size * b_cast.dtype.itemsize),
    )

    out = pl.pallas_call(
        mlp_kernel,
        out_shape=jax.ShapeDtypeStruct((B, D), jnp.float32),
        grid_spec=pltpu.PrefetchScalarGridSpec(
            num_scalar_prefetch=0,
            grid=(n_tiles,),
            in_specs=[
                pl.BlockSpec((tile, D), lambda i: (i, 0)),     # activations: tiled
                pl.BlockSpec((L, D, D), lambda i: (0, 0, 0)),  # weights: resident
                pl.BlockSpec((L, 1, D), lambda i: (0, 0, 0)),  # biases: resident
            ],
            out_specs=pl.BlockSpec((tile, D), lambda i: (i, 0)),
        ),
        compiler_params=pltpu.CompilerParams(
            dimension_semantics=("parallel",),
        ),
        cost_estimate=cost,
    )(x, w_bf16, b_cast)

    return out


def init_params(key, sizes):
    """Replicates MLP.__init__ parameter init deterministically:
    - weight ~ Normal(0, sqrt(1/in_features))  (xavier_normal_ in the module)
    - weight <- U @ V^T from its SVD (orthogonalization)
    - bias ~ Uniform(-1/sqrt(in), 1/sqrt(in))  (nn.Linear default)
    Returns stacked W^T of shape (L, in, out) and biases (L, 1, out), both f32.
    """
    layer_dims = list(zip(sizes[:-1], sizes[1:]))
    w_list, b_list = [], []
    for (fin, fout) in layer_dims:
        key, kw, kb = jax.random.split(key, 3)
        w = jax.random.normal(kw, (fout, fin), jnp.float32) * math.sqrt(1.0 / fin)
        u, _, vh = jnp.linalg.svd(w, full_matrices=False)
        w_orth = u @ vh                              # (out, in)
        bound = 1.0 / math.sqrt(fin)
        b = jax.random.uniform(kb, (fout,), jnp.float32, -bound, bound)
        w_list.append(w_orth.T)                      # store as (in, out)
        b_list.append(b[None, :])                    # (1, out)
    return jnp.stack(w_list, 0), jnp.stack(b_list, 0)


def mlp_reference(x, w_stack, b_stack, *, bf16_epilogue):
    """Pure-JAX reference mirroring the kernel's dtype handling."""
    cd = jnp.bfloat16 if bf16_epilogue else jnp.float32
    w = w_stack.astype(jnp.bfloat16)
    b = b_stack.astype(cd)
    h = x.astype(cd)
    for l in range(w_stack.shape[0]):
        z = jnp.dot(h.astype(jnp.bfloat16), w[l],
                    preferred_element_type=jnp.float32)
        h = jnp.maximum(z.astype(cd) + b[l], 0.0)
    return h.astype(jnp.float32)


def mlp_reference_f32(x, w_stack, b_stack):
    h = x
    for l in range(w_stack.shape[0]):
        h = jnp.maximum(h @ w_stack[l] + b_stack[l], 0.0)
    return h


if __name__ == "__main__":
    sizes = DEFAULT_SIZES

    key = jax.random.PRNGKey(0)
    key, kparams = jax.random.split(key)
    w_stack, b_stack = init_params(kparams, sizes)
    w_bf16, b_cast = prepare_params(w_stack, b_stack)     # hoisted one-time casts
    bf16_epi = (b_cast.dtype == jnp.bfloat16)

    # When the carry itself is bf16 (v6e/v7x epilogue) allow a few bf16 ulps of
    # divergence vs the matched reference (rounding-boundary flips); otherwise
    # keep the tight f32-epilogue tolerance.
    match_tol = 1e-2 if bf16_epi else 2e-3

    def check(batch, kseed):
        x = jax.random.normal(kseed, (batch, sizes[0]), jnp.float32)
        out = jax.block_until_ready(mlp_forward(x, w_bf16, b_cast))
        assert out.shape == (batch, sizes[-1])
        ref = mlp_reference(x, w_stack, b_stack, bf16_epilogue=bf16_epi)
        ref32 = mlp_reference_f32(x, w_stack, b_stack)
        assert jnp.allclose(out, ref, atol=match_tol, rtol=match_tol), \
            f"mismatch vs matched-dtype reference (B={batch})"
        assert jnp.allclose(out, ref32, atol=6e-2, rtol=6e-2), \
            f"mismatch vs f32 reference (B={batch})"

    key, k1, k2, k3 = jax.random.split(key, 4)
    check(8, k1)      # tiny batch: adaptive tile -> block == full array, no padding waste
    check(300, k2)    # ragged batch: single masked edge block (tile rounds to 304)
    check(2500, k3)   # multi-tile grid (tile=1024) + masked last block

    print("KERNEL_OK")
</pallas_src>

<mosaic_0001>
module attributes {stable_mosaic.version = 11 : i64} {
  func.func @mlp_kernel(%arg0: i32, %arg1: memref<8x128xf32, #tpu.memory_space<vmem>>, %arg2: memref<9x128x128xbf16, #tpu.memory_space<vmem>>, %arg3: memref<9x1x128xf32, #tpu.memory_space<vmem>>, %arg4: memref<8x128xf32, #tpu.memory_space<vmem>>) attributes {dimension_semantics = [#tpu.dimension_semantics<parallel>], iteration_bounds = array<i64: 1>, scalar_prefetch = 0 : i64, scratch_operands = 0 : i64, tpu.core_type = #tpu.core_type<tc>, window_params = [{transform_indices = @transform_0, window_bounds = array<i64: 8, 128>}, {pipeline_mode = #tpu.pipeline_mode<synchronous>, transform_indices = @transform_1, window_bounds = array<i64: 9, 128, 128>}, {pipeline_mode = #tpu.pipeline_mode<synchronous>, transform_indices = @transform_2, window_bounds = array<i64: 9, 1, 128>}, {transform_indices = @transform_3, window_bounds = array<i64: 8, 128>}]} {
    %c0 = arith.constant 0 : index
    %c0_0 = arith.constant 0 : index
    %0 = vector.load %arg1[%c0, %c0_0] : memref<8x128xf32, #tpu.memory_space<vmem>>, vector<8x128xf32>
    %c0_i32 = arith.constant 0 : i32
    %1 = arith.truncf %0 : vector<8x128xf32> to vector<8x128xbf16>
    %2 = arith.index_cast %c0_i32 : i32 to index
    %c0_1 = arith.constant 0 : index
    %c0_2 = arith.constant 0 : index
    %3 = vector.load %arg2[%2, %c0_1, %c0_2] : memref<9x128x128xbf16, #tpu.memory_space<vmem>>, vector<1x128x128xbf16>
    %4 = vector.shape_cast %3 : vector<1x128x128xbf16> to vector<128x128xbf16>
    %cst = arith.constant dense<0.000000e+00> : vector<8x128xf32>
    %5 = tpu.matmul %1, %4, %cst {dimension_numbers = #tpu.dot_dimension_numbers<[1], [0], [0], [1], [0, 0, 1, 1], [], []>} : vector<8x128xbf16>, vector<128x128xbf16>, vector<8x128xf32> -> vector<8x128xf32>
    %6 = arith.index_cast %c0_i32 : i32 to index
    %c0_3 = arith.constant 0 : index
    %c0_4 = arith.constant 0 : index
    %7 = vector.load %arg3[%6, %c0_3, %c0_4] : memref<9x1x128xf32, #tpu.memory_space<vmem>>, vector<1x1x128xf32>
    %8 = vector.shape_cast %7 : vector<1x1x128xf32> to vector<1x128xf32>
    %9 = vector.broadcast %8 : vector<1x128xf32> to vector<8x128xf32>
    %10 = arith.addf %5, %9 : vector<8x128xf32>
    %cst_5 = arith.constant 0.000000e+00 : f32
    %11 = vector.broadcast %cst_5 : f32 to vector<8x128xf32>
    %12 = arith.maximumf %10, %11 : vector<8x128xf32>
    %c1_i32 = arith.constant 1 : i32
    %13 = arith.truncf %12 : vector<8x128xf32> to vector<8x128xbf16>
    %14 = arith.index_cast %c1_i32 : i32 to index
    %c0_6 = arith.constant 0 : index
    %c0_7 = arith.constant 0 : index
    %15 = vector.load %arg2[%14, %c0_6, %c0_7] : memref<9x128x128xbf16, #tpu.memory_space<vmem>>, vector<1x128x128xbf16>
    %16 = vector.shape_cast %15 : vector<1x128x128xbf16> to vector<128x128xbf16>
    %cst_8 = arith.constant dense<0.000000e+00> : vector<8x128xf32>
    %17 = tpu.matmul %13, %16, %cst_8 {dimension_numbers = #tpu.dot_dimension_numbers<[1], [0], [0], [1], [0, 0, 1, 1], [], []>} : vector<8x128xbf16>, vector<128x128xbf16>, vector<8x128xf32> -> vector<8x128xf32>
    %18 = arith.index_cast %c1_i32 : i32 to index
    %c0_9 = arith.constant 0 : index
    %c0_10 = arith.constant 0 : index
    %19 = vector.load %arg3[%18, %c0_9, %c0_10] : memref<9x1x128xf32, #tpu.memory_space<vmem>>, vector<1x1x128xf32>
    %20 = vector.shape_cast %19 : vector<1x1x128xf32> to vector<1x128xf32>
    %21 = vector.broadcast %20 : vector<1x128xf32> to vector<8x128xf32>
    %22 = arith.addf %17, %21 : vector<8x128xf32>
    %cst_11 = arith.constant 0.000000e+00 : f32
    %23 = vector.broadcast %cst_11 : f32 to vector<8x128xf32>
    %24 = arith.maximumf %22, %23 : vector<8x128xf32>
    %c2_i32 = arith.constant 2 : i32
    %25 = arith.truncf %24 : vector<8x128xf32> to vector<8x128xbf16>
    %26 = arith.index_cast %c2_i32 : i32 to index
    %c0_12 = arith.constant 0 : index
    %c0_13 = arith.constant 0 : index
    %27 = vector.load %arg2[%26, %c0_12, %c0_13] : memref<9x128x128xbf16, #tpu.memory_space<vmem>>, vector<1x128x128xbf16>
    %28 = vector.shape_cast %27 : vector<1x128x128xbf16> to vector<128x128xbf16>
    %cst_14 = arith.constant dense<0.000000e+00> : vector<8x128xf32>
    %29 = tpu.matmul %25, %28, %cst_14 {dimension_numbers = #tpu.dot_dimension_numbers<[1], [0], [0], [1], [0, 0, 1, 1], [], []>} : vector<8x128xbf16>, vector<128x128xbf16>, vector<8x128xf32> -> vector<8x128xf32>
    %30 = arith.index_cast %c2_i32 : i32 to index
    %c0_15 = arith.constant 0 : index
    %c0_16 = arith.constant 0 : index
    %31 = vector.load %arg3[%30, %c0_15, %c0_16] : memref<9x1x128xf32, #tpu.memory_space<vmem>>, vector<1x1x128xf32>
    %32 = vector.shape_cast %31 : vector<1x1x128xf32> to vector<1x128xf32>
    %33 = vector.broadcast %32 : vector<1x128xf32> to vector<8x128xf32>
    %34 = arith.addf %29, %33 : vector<8x128xf32>
    %cst_17 = arith.constant 0.000000e+00 : f32
    %35 = vector.broadcast %cst_17 : f32 to vector<8x128xf32>
    %36 = arith.maximumf %34, %35 : vector<8x128xf32>
    %c3_i32 = arith.constant 3 : i32
    %37 = arith.truncf %36 : vector<8x128xf32> to vector<8x128xbf16>
    %38 = arith.index_cast %c3_i32 : i32 to index
    %c0_18 = arith.constant 0 : index
    %c0_19 = arith.constant 0 : index
    %39 = vector.load %arg2[%38, %c0_18, %c0_19] : memref<9x128x128xbf16, #tpu.memory_space<vmem>>, vector<1x128x128xbf16>
    %40 = vector.shape_cast %39 : vector<1x128x128xbf16> to vector<128x128xbf16>
    %cst_20 = arith.constant dense<0.000000e+00> : vector<8x128xf32>
    %41 = tpu.matmul %37, %40, %cst_20 {dimension_numbers = #tpu.dot_dimension_numbers<[1], [0], [0], [1], [0, 0, 1, 1], [], []>} : vector<8x128xbf16>, vector<128x128xbf16>, vector<8x128xf32> -> vector<8x128xf32>
    %42 = arith.index_cast %c3_i32 : i32 to index
    %c0_21 = arith.constant 0 : index
    %c0_22 = arith.constant 0 : index
    %43 = vector.load %arg3[%42, %c0_21, %c0_22] : memref<9x1x128xf32, #tpu.memory_space<vmem>>, vector<1x1x128xf32>
    %44 = vector.shape_cast %43 : vector<1x1x128xf32> to vector<1x128xf32>
    %45 = vector.broadcast %44 : vector<1x128xf32> to vector<8x128xf32>
    %46 = arith.addf %41, %45 : vector<8x128xf32>
    %cst_23 = arith.constant 0.000000e+00 : f32
    %47 = vector.broadcast %cst_23 : f32 to vector<8x128xf32>
    %48 = arith.maximumf %46, %47 : vector<8x128xf32>
    %c4_i32 = arith.constant 4 : i32
    %49 = arith.truncf %48 : vector<8x128xf32> to vector<8x128xbf16>
    %50 = arith.index_cast %c4_i32 : i32 to index
    %c0_24 = arith.constant 0 : index
    %c0_25 = arith.constant 0 : index
    %51 = vector.load %arg2[%50, %c0_24, %c0_25] : memref<9x128x128xbf16, #tpu.memory_space<vmem>>, vector<1x128x128xbf16>
    %52 = vector.shape_cast %51 : vector<1x128x128xbf16> to vector<128x128xbf16>
    %cst_26 = arith.constant dense<0.000000e+00> : vector<8x128xf32>
    %53 = tpu.matmul %49, %52, %cst_26 {dimension_numbers = #tpu.dot_dimension_numbers<[1], [0], [0], [1], [0, 0, 1, 1], [], []>} : vector<8x128xbf16>, vector<128x128xbf16>, vector<8x128xf32> -> vector<8x128xf32>
    %54 = arith.index_cast %c4_i32 : i32 to index
    %c0_27 = arith.constant 0 : index
    %c0_28 = arith.constant 0 : index
    %55 = vector.load %arg3[%54, %c0_27, %c0_28] : memref<9x1x128xf32, #tpu.memory_space<vmem>>, vector<1x1x128xf32>
    %56 = vector.shape_cast %55 : vector<1x1x128xf32> to vector<1x128xf32>
    %57 = vector.broadcast %56 : vector<1x128xf32> to vector<8x128xf32>
    %58 = arith.addf %53, %57 : vector<8x128xf32>
    %cst_29 = arith.constant 0.000000e+00 : f32
    %59 = vector.broadcast %cst_29 : f32 to vector<8x128xf32>
    %60 = arith.maximumf %58, %59 : vector<8x128xf32>
    %c5_i32 = arith.constant 5 : i32
    %61 = arith.truncf %60 : vector<8x128xf32> to vector<8x128xbf16>
    %62 = arith.index_cast %c5_i32 : i32 to index
    %c0_30 = arith.constant 0 : index
    %c0_31 = arith.constant 0 : index
    %63 = vector.load %arg2[%62, %c0_30, %c0_31] : memref<9x128x128xbf16, #tpu.memory_space<vmem>>, vector<1x128x128xbf16>
    %64 = vector.shape_cast %63 : vector<1x128x128xbf16> to vector<128x128xbf16>
    %cst_32 = arith.constant dense<0.000000e+00> : vector<8x128xf32>
    %65 = tpu.matmul %61, %64, %cst_32 {dimension_numbers = #tpu.dot_dimension_numbers<[1], [0], [0], [1], [0, 0, 1, 1], [], []>} : vector<8x128xbf16>, vector<128x128xbf16>, vector<8x128xf32> -> vector<8x128xf32>
    %66 = arith.index_cast %c5_i32 : i32 to index
    %c0_33 = arith.constant 0 : index
    %c0_34 = arith.constant 0 : index
    %67 = vector.load %arg3[%66, %c0_33, %c0_34] : memref<9x1x128xf32, #tpu.memory_space<vmem>>, vector<1x1x128xf32>
    %68 = vector.shape_cast %67 : vector<1x1x128xf32> to vector<1x128xf32>
    %69 = vector.broadcast %68 : vector<1x128xf32> to vector<8x128xf32>
    %70 = arith.addf %65, %69 : vector<8x128xf32>
    %cst_35 = arith.constant 0.000000e+00 : f32
    %71 = vector.broadcast %cst_35 : f32 to vector<8x128xf32>
    %72 = arith.maximumf %70, %71 : vector<8x128xf32>
    %c6_i32 = arith.constant 6 : i32
    %73 = arith.truncf %72 : vector<8x128xf32> to vector<8x128xbf16>
    %74 = arith.index_cast %c6_i32 : i32 to index
    %c0_36 = arith.constant 0 : index
    %c0_37 = arith.constant 0 : index
    %75 = vector.load %arg2[%74, %c0_36, %c0_37] : memref<9x128x128xbf16, #tpu.memory_space<vmem>>, vector<1x128x128xbf16>
    %76 = vector.shape_cast %75 : vector<1x128x128xbf16> to vector<128x128xbf16>
    %cst_38 = arith.constant dense<0.000000e+00> : vector<8x128xf32>
    %77 = tpu.matmul %73, %76, %cst_38 {dimension_numbers = #tpu.dot_dimension_numbers<[1], [0], [0], [1], [0, 0, 1, 1], [], []>} : vector<8x128xbf16>, vector<128x128xbf16>, vector<8x128xf32> -> vector<8x128xf32>
    %78 = arith.index_cast %c6_i32 : i32 to index
    %c0_39 = arith.constant 0 : index
    %c0_40 = arith.constant 0 : index
    %79 = vector.load %arg3[%78, %c0_39, %c0_40] : memref<9x1x128xf32, #tpu.memory_space<vmem>>, vector<1x1x128xf32>
    %80 = vector.shape_cast %79 : vector<1x1x128xf32> to vector<1x128xf32>
    %81 = vector.broadcast %80 : vector<1x128xf32> to vector<8x128xf32>
    %82 = arith.addf %77, %81 : vector<8x128xf32>
    %cst_41 = arith.constant 0.000000e+00 : f32
    %83 = vector.broadcast %cst_41 : f32 to vector<8x128xf32>
    %84 = arith.maximumf %82, %83 : vector<8x128xf32>
    %c7_i32 = arith.constant 7 : i32
    %85 = arith.truncf %84 : vector<8x128xf32> to vector<8x128xbf16>
    %86 = arith.index_cast %c7_i32 : i32 to index
    %c0_42 = arith.constant 0 : index
    %c0_43 = arith.constant 0 : index
    %87 = vector.load %arg2[%86, %c0_42, %c0_43] : memref<9x128x128xbf16, #tpu.memory_space<vmem>>, vector<1x128x128xbf16>
    %88 = vector.shape_cast %87 : vector<1x128x128xbf16> to vector<128x128xbf16>
    %cst_44 = arith.constant dense<0.000000e+00> : vector<8x128xf32>
    %89 = tpu.matmul %85, %88, %cst_44 {dimension_numbers = #tpu.dot_dimension_numbers<[1], [0], [0], [1], [0, 0, 1, 1], [], []>} : vector<8x128xbf16>, vector<128x128xbf16>, vector<8x128xf32> -> vector<8x128xf32>
    %90 = arith.index_cast %c7_i32 : i32 to index
    %c0_45 = arith.constant 0 : index
    %c0_46 = arith.constant 0 : index
    %91 = vector.load %arg3[%90, %c0_45, %c0_46] : memref<9x1x128xf32, #tpu.memory_space<vmem>>, vector<1x1x128xf32>
    %92 = vector.shape_cast %91 : vector<1x1x128xf32> to vector<1x128xf32>
    %93 = vector.broadcast %92 : vector<1x128xf32> to vector<8x128xf32>
    %94 = arith.addf %89, %93 : vector<8x128xf32>
    %cst_47 = arith.constant 0.000000e+00 : f32
    %95 = vector.broadcast %cst_47 : f32 to vector<8x128xf32>
    %96 = arith.maximumf %94, %95 : vector<8x128xf32>
    %c8_i32 = arith.constant 8 : i32
    %97 = arith.truncf %96 : vector<8x128xf32> to vector<8x128xbf16>
    %98 = arith.index_cast %c8_i32 : i32 to index
    %c0_48 = arith.constant 0 : index
    %c0_49 = arith.constant 0 : index
    %99 = vector.load %arg2[%98, %c0_48, %c0_49] : memref<9x128x128xbf16, #tpu.memory_space<vmem>>, vector<1x128x128xbf16>
    %100 = vector.shape_cast %99 : vector<1x128x128xbf16> to vector<128x128xbf16>
    %cst_50 = arith.constant dense<0.000000e+00> : vector<8x128xf32>
    %101 = tpu.matmul %97, %100, %cst_50 {dimension_numbers = #tpu.dot_dimension_numbers<[1], [0], [0], [1], [0, 0, 1, 1], [], []>} : vector<8x128xbf16>, vector<128x128xbf16>, vector<8x128xf32> -> vector<8x128xf32>
    %102 = arith.index_cast %c8_i32 : i32 to index
    %c0_51 = arith.constant 0 : index
    %c0_52 = arith.constant 0 : index
    %103 = vector.load %arg3[%102, %c0_51, %c0_52] : memref<9x1x128xf32, #tpu.memory_space<vmem>>, vector<1x1x128xf32>
    %104 = vector.shape_cast %103 : vector<1x1x128xf32> to vector<1x128xf32>
    %105 = vector.broadcast %104 : vector<1x128xf32> to vector<8x128xf32>
    %106 = arith.addf %101, %105 : vector<8x128xf32>
    %cst_53 = arith.constant 0.000000e+00 : f32
    %107 = vector.broadcast %cst_53 : f32 to vector<8x128xf32>
    %108 = arith.maximumf %106, %107 : vector<8x128xf32>
    %c9_i32 = arith.constant 9 : i32
    %c0_54 = arith.constant 0 : index
    %c0_55 = arith.constant 0 : index
    %109 = vector.load %arg4[%c0_54, %c0_55] : memref<8x128xf32, #tpu.memory_space<vmem>>, vector<8x128xf32>
    tpu.vector_store %arg4[%c0_54, %c0_55], %108 {strides = array<i32>} : memref<8x128xf32, #tpu.memory_space<vmem>>, vector<8x128xf32>,
    return
  }
  func.func @transform_0(%arg0: i32) -> (i32, i32) {
    %c0_i32 = arith.constant 0 : i32
    %c0_i32_0 = arith.constant 0 : i32
    return %arg0, %c0_i32 : i32, i32
  }
  func.func @transform_1(%arg0: i32) -> (i32, i32, i32) {
    %c0_i32 = arith.constant 0 : i32
    %c0_i32_0 = arith.constant 0 : i32
    %c0_i32_1 = arith.constant 0 : i32
    %c0_i32_2 = arith.constant 0 : i32
    return %c0_i32, %c0_i32_0, %c0_i32_1 : i32, i32, i32
  }
  func.func @transform_2(%arg0: i32) -> (i32, i32, i32) {
    %c0_i32 = arith.constant 0 : i32
    %c0_i32_0 = arith.constant 0 : i32
    %c0_i32_1 = arith.constant 0 : i32
    %c0_i32_2 = arith.constant 0 : i32
    return %c0_i32, %c0_i32_0, %c0_i32_1 : i32, i32, i32
  }
  func.func @transform_3(%arg0: i32) -> (i32, i32) {
    %c0_i32 = arith.constant 0 : i32
    %c0_i32_0 = arith.constant 0 : i32
    return %arg0, %c0_i32 : i32, i32
  }
}

</mosaic_0001>

<llo_original>
// kernel: tpu_custom_call.1
$region0: #{tpu_custom_call.1}
  #allocation0 [shape = 'u32[]', space=smem, size = 0x4, offset = 0x4, fixed_abs, tag = 'smem constant byte address 0x4 - core index']
  #allocation1 [shape = 'u32[144,128]{1,0:T(1,128)}', space=vmem, size = 0x12000, scoped, tag = 'internal scratch']
  %s0 = inlined_call_operand.hbm [shape: f32[8,128], index: 0, kind: input, shape index: {}]
  %s1 = inlined_call_operand.hbm [shape: bf16[9,128,128], index: 1, kind: input, shape index: {}]
  %s2 = inlined_call_operand.hbm [shape: f32[9,1,128], index: 2, kind: input, shape index: {}]
  %s3 = inlined_call_operand.hbm [shape: f32[8,128], index: 3, kind: output, shape index: {}]
  %s4 = sld [smem:[#allocation0]]
  $region34: #{tpu_custom_call.1} parent=0
    _
  %s6 = ssub.s32 1, %s4
  %s7 = scalar_select 0, %s6, %s4
  $region1: #{tpu_custom_call.1} parent=0
    #allocation2 [shape = 'u8[4096]{0}', space=vmem, size = 0x1000, scoped, tag = 'input window, operand 0, single buffered']
    #allocation3 [shape = 's32[1]{0}', space=sflag, size = 0x4, scoped, tag = 'scoped memory for tpu_custom_call.1']
    #allocation4 [shape = 's32[1]{0}', space=sflag, size = 0x4, scoped, tag = 'scoped memory for tpu_custom_call.1']
    #allocation5 [shape = 'u8[294912]{0}', space=vmem, size = 0x48000, scoped, tag = 'input window, operand 1, single buffered']
    #allocation6 [shape = 's32[1]{0}', space=sflag, size = 0x4, scoped, tag = 'scoped memory for tpu_custom_call.1']
    #allocation7 [shape = 'u8[4608]{0}', space=vmem, size = 0x1400, scoped, tag = 'input window, operand 2, single buffered']
    #allocation8 [shape = 'u8[4096]{0}', space=vmem, size = 0x1000, scoped, tag = 'output window, operand 0, single buffered']
    %8 = vsyncpa [#allocation3], 0
    %9 = vsyncpa [#allocation6], 0
    %10 = vsyncpa [#allocation4], 0
    // Predicated region
    $region2: #{tpu_custom_call.1} parent=1 // pred_check
      _
    $region3: #{tpu_custom_call.1} parent=1 // pred_check_branch
      %12 = sbr.rel (0) target = $region5
    $region4: #{tpu_custom_call.1} parent=1 // pred_region
      %s14 = ssub.s32 128, 128
      %15 = vsyncadd [#allocation3], %s14
      %s17 = sshll.u32 [#allocation2], 4
      %s18 = int_to_ptr.vmem [resolvable:$true] %s17
      %20 = dma.hbm_to_vmem [thread:$0]  %s0, 128, %s18, [#allocation3]
    $region5: #{tpu_custom_call.1} parent=1 // pred_fallthru
      _
    // Predicated region
    $region6: #{tpu_custom_call.1} parent=1 // pred_check
      _
    $region7: #{tpu_custom_call.1} parent=1 // pred_check_branch
      %22 = sbr.rel (0) target = $region9
    $region8: #{tpu_custom_call.1} parent=1 // pred_region
      %s24 = ssub.s32 9216, 9216
      %25 = vsyncadd [#allocation6], %s24
      %s26 = sshll.u32 [#allocation5], 4
      %s27 = int_to_ptr.vmem [resolvable:$true] %s26
      %32 = dma.hbm_to_vmem [thread:$0]  %s1, 9216, %s27, [#allocation6], 64, 64, 4
    $region9: #{tpu_custom_call.1} parent=1 // pred_fallthru
      _
    // Predicated region
    $region10: #{tpu_custom_call.1} parent=1 // pred_check
      _
    $region11: #{tpu_custom_call.1} parent=1 // pred_check_branch
      %34 = sbr.rel (0) target = $region13
    $region12: #{tpu_custom_call.1} parent=1 // pred_region
      %s36 = ssub.s32 144, 144
      %37 = vsyncadd [#allocation6], %s36
      %s38 = sshll.u32 [#allocation7], 4
      %s39 = int_to_ptr.vmem [resolvable:$true] %s38
      %44 = dma.hbm_to_vmem [thread:$0]  %s2, 144, %s39, [#allocation6], 16, 16, 1
    $region13: #{tpu_custom_call.1} parent=1 // pred_fallthru
      _
    // Predicated region
    $region14: #{tpu_custom_call.1} parent=1 // pred_check
      _
    $region15: #{tpu_custom_call.1} parent=1 // pred_check_branch
      %46 = sbr.rel (0) target = $region17
    $region16: #{tpu_custom_call.1} parent=1 // pred_region
      %47 = dma.done [#allocation3], 128
    $region17: #{tpu_custom_call.1} parent=1 // pred_fallthru
      _
    // Predicated region
    $region18: #{tpu_custom_call.1} parent=1 // pred_check
      _
    $region19: #{tpu_custom_call.1} parent=1 // pred_check_branch
      %49 = sbr.rel (0) target = $region21
    $region20: #{tpu_custom_call.1} parent=1 // pred_region
      %50 = dma.done [#allocation6], 9216
    $region21: #{tpu_custom_call.1} parent=1 // pred_fallthru
      _
    // Predicated region
    $region22: #{tpu_custom_call.1} parent=1 // pred_check
      _
    $region23: #{tpu_custom_call.1} parent=1 // pred_check_branch
      %52 = sbr.rel (0) target = $region25
    $region24: #{tpu_custom_call.1} parent=1 // pred_region
      %53 = dma.done [#allocation6], 144
    $region25: #{tpu_custom_call.1} parent=1 // pred_fallthru
      _
    %v55 = vld [vmem:[#allocation2] sm:$0xff]
    %v56 = vpack.c.bf16 %v55, %v55
    %v57 = vld [vmem:[#allocation5] sm:$0xf]
    %v58 = vld [vmem:[#allocation5 + $0x4] sm:$0xf]
    %v59 = vld [vmem:[#allocation5 + $0x8] sm:$0xf]
    %v60 = vld [vmem:[#allocation5 + $0xc] sm:$0xf]
    %v61 = vld [vmem:[#allocation5 + $0x10] sm:$0xf]
    %v62 = vld [vmem:[#allocation5 + $0x14] sm:$0xf]
    %v63 = vld [vmem:[#allocation5 + $0x18] sm:$0xf]
    %v64 = vld [vmem:[#allocation5 + $0x1c] sm:$0xf]
    %v65 = vld [vmem:[#allocation5 + $0x20] sm:$0xf]
    %v66 = vld [vmem:[#allocation5 + $0x24] sm:$0xf]
    %v67 = vld [vmem:[#allocation5 + $0x28] sm:$0xf]
    %v68 = vld [vmem:[#allocation5 + $0x2c] sm:$0xf]
    %v69 = vld [vmem:[#allocation5 + $0x30] sm:$0xf]
    %v70 = vld [vmem:[#allocation5 + $0x34] sm:$0xf]
    %v71 = vld [vmem:[#allocation5 + $0x38] sm:$0xf]
    %v72 = vld [vmem:[#allocation5 + $0x3c] sm:$0xf]
    %v73 = vld [vmem:[#allocation7] sm:$0x1]
    %v75 = vlaneseq
    %v76 = vshrl.u32 %v75, 7
    %v77 = vsub.s32 0, %v76
    %v78 = vrot.slane %v73, %v77
    %v96 = vunpack.c.l.b16 %v57
    %v97 = vunpack.c.l.b16 %v58
    %v98 = vunpack.c.l.b16 %v59
    %v99 = vunpack.c.l.b16 %v60
    %v100 = vunpack.c.l.b16 %v61
    %v101 = vunpack.c.l.b16 %v62
    %v102 = vunpack.c.l.b16 %v63
    %v103 = vunpack.c.l.b16 %v64
    %v104 = vunpack.c.l.b16 %v65
    %v105 = vunpack.c.l.b16 %v66
    %v106 = vunpack.c.l.b16 %v67
    %v107 = vunpack.c.l.b16 %v68
    %v108 = vunpack.c.l.b16 %v69
    %v109 = vunpack.c.l.b16 %v70
    %v110 = vunpack.c.l.b16 %v71
    %v111 = vunpack.c.l.b16 %v72
    %v112 = vpack.c.b16 %v97, %v96
    %v113 = vpack.c.b16 %v99, %v98
    %v114 = vpack.c.b16 %v101, %v100
    %v115 = vpack.c.b16 %v103, %v102
    %v116 = vpack.c.b16 %v105, %v104
    %v117 = vpack.c.b16 %v107, %v106
    %v118 = vpack.c.b16 %v109, %v108
    %v119 = vpack.c.b16 %v111, %v110
    %128 = vmatprep.subr.bf16.mxu0 0
    %129 = vmatpush1.bf16.msra.mxu0 %v112
    %130 = vmatprep.subr.bf16.mxu0 0
    %131 = vmatpush1.bf16.msra.mxu0 %v113
    %132 = vmatprep.subr.bf16.mxu0 0
    %133 = vmatpush1.bf16.msra.mxu0 %v114
    %134 = vmatprep.subr.bf16.mxu0 0
    %135 = vmatpush1.bf16.msra.mxu0 %v115
    %136 = vmatprep.subr.bf16.mxu0 0
    %137 = vmatpush1.bf16.msra.mxu0 %v116
    %138 = vmatprep.subr.bf16.mxu0 0
    %139 = vmatpush1.bf16.msra.mxu0 %v117
    %140 = vmatprep.subr.bf16.mxu0 0
    %141 = vmatpush1.bf16.msra.mxu0 %v118
    %142 = vmatprep.subr.bf16.mxu0 0
    %143 = vmatpush1.bf16.msra.mxu0 %v119
    %144 = vmatprep.subr.bf16.mxu0 0
    %145 = vmatpush1.bf16.msra.mxu0 0
    %146 = vmatprep.subr.bf16.mxu0 0
    %147 = vmatpush1.bf16.msra.mxu0 0
    %148 = vmatprep.subr.bf16.mxu0 0
    %149 = vmatpush1.bf16.msra.mxu0 0
    %150 = vmatprep.subr.bf16.mxu0 0
    %151 = vmatpush1.bf16.msra.mxu0 0
    %152 = vmatprep.subr.bf16.mxu0 0
    %153 = vmatpush1.bf16.msra.mxu0 0
    %154 = vmatprep.subr.bf16.mxu0 0
    %155 = vmatpush1.bf16.msra.mxu0 0
    %156 = vmatprep.subr.bf16.mxu0 0
    %157 = vmatpush1.bf16.msra.mxu0 0
    %158 = vmatprep.subr.bf16.mxu0 0
    %159 = vmatpush1.bf16.msra.mxu0 0
    %160 = vmatprep.mubr.bf16.mxu0 0
    %161 = vmatmul.mubr.bf16.gmra.mrb[0].mxu0 %v56
    %v162 = vpop.f32.mrb[0].mxu0
    %v163 = vadd.f32 %v78, %v162
    %v164 = vpop.f32.mrb[0].mxu0
    %v165 = vpop.f32.mrb[0].mxu0
    %v166 = vpop.f32.mrb[0].mxu0
    %167 = vdwg.mxu0
    %v168 = vmax.f32 %v163, 0.0
    %v169 = vpack.c.bf16 %v168, %v168
    %s170 = scalar_lea.vmem [#allocation5], 64
    %v171 = vld [vmem:[%s170] sm:$0xf]
    %v172 = vld [vmem:[%s170 + $0x4] sm:$0xf]
    %v173 = vld [vmem:[%s170 + $0x8] sm:$0xf]
    %v174 = vld [vmem:[%s170 + $0xc] sm:$0xf]
    %v175 = vld [vmem:[%s170 + $0x10] sm:$0xf]
    %v176 = vld [vmem:[%s170 + $0x14] sm:$0xf]
    %v177 = vld [vmem:[%s170 + $0x18] sm:$0xf]
    %v178 = vld [vmem:[%s170 + $0x1c] sm:$0xf]
    %v179 = vld [vmem:[%s170 + $0x20] sm:$0xf]
    %v180 = vld [vmem:[%s170 + $0x24] sm:$0xf]
    %v181 = vld [vmem:[%s170 + $0x28] sm:$0xf]
    %v182 = vld [vmem:[%s170 + $0x2c] sm:$0xf]
    %v183 = vld [vmem:[%s170 + $0x30] sm:$0xf]
    %v184 = vld [vmem:[%s170 + $0x34] sm:$0xf]
    %v185 = vld [vmem:[%s170 + $0x38] sm:$0xf]
    %v186 = vld [vmem:[%s170 + $0x3c] sm:$0xf]
    %s187 = scalar_lea.vmem [#allocation7], 1
    %v188 = vld [vmem:[%s187] sm:$0x1]
    %v190 = vlaneseq
    %v191 = vshrl.u32 %v190, 7
    %v192 = vsub.s32 0, %v191
    %v193 = vrot.slane %v188, %v192
    %v211 = vunpack.c.l.b16 %v171
    %v212 = vunpack.c.l.b16 %v172
    %v213 = vunpack.c.l.b16 %v173
    %v214 = vunpack.c.l.b16 %v174
    %v215 = vunpack.c.l.b16 %v175
    %v216 = vunpack.c.l.b16 %v176
    %v217 = vunpack.c.l.b16 %v177
    %v218 = vunpack.c.l.b16 %v178
    %v219 = vunpack.c.l.b16 %v179
    %v220 = vunpack.c.l.b16 %v180
    %v221 = vunpack.c.l.b16 %v181
    %v222 = vunpack.c.l.b16 %v182
    %v223 = vunpack.c.l.b16 %v183
    %v224 = vunpack.c.l.b16 %v184
    %v225 = vunpack.c.l.b16 %v185
    %v226 = vunpack.c.l.b16 %v186
    %v227 = vpack.c.b16 %v212, %v211
    %v228 = vpack.c.b16 %v214, %v213
    %v229 = vpack.c.b16 %v216, %v215
    %v230 = vpack.c.b16 %v218, %v217
    %v231 = vpack.c.b16 %v220, %v219
    %v232 = vpack.c.b16 %v222, %v221
    %v233 = vpack.c.b16 %v224, %v223
    %v234 = vpack.c.b16 %v226, %v225
    %243 = vmatprep.subr.bf16.mxu0 0
    %244 = vmatpush1.bf16.msra.mxu0 %v227
    %245 = vmatprep.subr.bf16.mxu0 0
    %246 = vmatpush1.bf16.msra.mxu0 %v228
    %247 = vmatprep.subr.bf16.mxu0 0
    %248 = vmatpush1.bf16.msra.mxu0 %v229
    %249 = vmatprep.subr.bf16.mxu0 0
    %250 = vmatpush1.bf16.msra.mxu0 %v230
    %251 = vmatprep.subr.bf16.mxu0 0
    %252 = vmatpush1.bf16.msra.mxu0 %v231
    %253 = vmatprep.subr.bf16.mxu0 0
    %254 = vmatpush1.bf16.msra.mxu0 %v232
    %255 = vmatprep.subr.bf16.mxu0 0
    %256 = vmatpush1.bf16.msra.mxu0 %v233
    %257 = vmatprep.subr.bf16.mxu0 0
    %258 = vmatpush1.bf16.msra.mxu0 %v234
    %259 = vmatprep.subr.bf16.mxu0 0
    %260 = vmatpush1.bf16.msra.mxu0 0
    %261 = vmatprep.subr.bf16.mxu0 0
    %262 = vmatpush1.bf16.msra.mxu0 0
    %263 = vmatprep.subr.bf16.mxu0 0
    %264 = vmatpush1.bf16.msra.mxu0 0
    %265 = vmatprep.subr.bf16.mxu0 0
    %266 = vmatpush1.bf16.msra.mxu0 0
    %267 = vmatprep.subr.bf16.mxu0 0
    %268 = vmatpush1.bf16.msra.mxu0 0
    %269 = vmatprep.subr.bf16.mxu0 0
    %270 = vmatpush1.bf16.msra.mxu0 0
    %271 = vmatprep.subr.bf16.mxu0 0
    %272 = vmatpush1.bf16.msra.mxu0 0
    %273 = vmatprep.subr.bf16.mxu0 0
    %274 = vmatpush1.bf16.msra.mxu0 0
    %275 = vmatprep.mubr.bf16.mxu0 0
    %276 = vmatmul.mubr.bf16.gmra.mrb[0].mxu0 %v169
    %v277 = vpop.f32.mrb[0].mxu0
    %v278 = vadd.f32 %v193, %v277
    %v279 = vpop.f32.mrb[0].mxu0
    %v280 = vpop.f32.mrb[0].mxu0
    %v281 = vpop.f32.mrb[0].mxu0
    %282 = vdwg.mxu0
    %v283 = vmax.f32 %v278, 0.0
    %v284 = vpack.c.bf16 %v283, %v283
    %s285 = scalar_lea.vmem [#allocation5], 128
    %v286 = vld [vmem:[%s285] sm:$0xf]
    %v287 = vld [vmem:[%s285 + $0x4] sm:$0xf]
    %v288 = vld [vmem:[%s285 + $0x8] sm:$0xf]
    %v289 = vld [vmem:[%s285 + $0xc] sm:$0xf]
    %v290 = vld [vmem:[%s285 + $0x10] sm:$0xf]
    %v291 = vld [vmem:[%s285 + $0x14] sm:$0xf]
    %v292 = vld [vmem:[%s285 + $0x18] sm:$0xf]
    %v293 = vld [vmem:[%s285 + $0x1c] sm:$0xf]
    %v294 = vld [vmem:[%s285 + $0x20] sm:$0xf]
    %v295 = vld [vmem:[%s285 + $0x24] sm:$0xf]
    %v296 = vld [vmem:[%s285 + $0x28] sm:$0xf]
    %v297 = vld [vmem:[%s285 + $0x2c] sm:$0xf]
    %v298 = vld [vmem:[%s285 + $0x30] sm:$0xf]
    %v299 = vld [vmem:[%s285 + $0x34] sm:$0xf]
    %v300 = vld [vmem:[%s285 + $0x38] sm:$0xf]
    %v301 = vld [vmem:[%s285 + $0x3c] sm:$0xf]
    %s302 = scalar_lea.vmem [#allocation7], 2
    %v303 = vld [vmem:[%s302] sm:$0x1]
    %v305 = vlaneseq
    %v306 = vshrl.u32 %v305, 7
    %v307 = vsub.s32 0, %v306
    %v308 = vrot.slane %v303, %v307
    %v326 = vunpack.c.l.b16 %v286
    %v327 = vunpack.c.l.b16 %v287
    %v328 = vunpack.c.l.b16 %v288
    %v329 = vunpack.c.l.b16 %v289
    %v330 = vunpack.c.l.b16 %v290
    %v331 = vunpack.c.l.b16 %v291
    %v332 = vunpack.c.l.b16 %v292
    %v333 = vunpack.c.l.b16 %v293
    %v334 = vunpack.c.l.b16 %v294
    %v335 = vunpack.c.l.b16 %v295
    %v336 = vunpack.c.l.b16 %v296
    %v337 = vunpack.c.l.b16 %v297
    %v338 = vunpack.c.l.b16 %v298
    %v339 = vunpack.c.l.b16 %v299
    %v340 = vunpack.c.l.b16 %v300
    %v341 = vunpack.c.l.b16 %v301
    %v342 = vpack.c.b16 %v327, %v326
    %v343 = vpack.c.b16 %v329, %v328
    %v344 = vpack.c.b16 %v331, %v330
    %v345 = vpack.c.b16 %v333, %v332
    %v346 = vpack.c.b16 %v335, %v334
    %v347 = vpack.c.b16 %v337, %v336
    %v348 = vpack.c.b16 %v339, %v338
    %v349 = vpack.c.b16 %v341, %v340
    %358 = vmatprep.subr.bf16.mxu0 0
    %359 = vmatpush1.bf16.msra.mxu0 %v342
    %360 = vmatprep.subr.bf16.mxu0 0
    %361 = vmatpush1.bf16.msra.mxu0 %v343
    %362 = vmatprep.subr.bf16.mxu0 0
    %363 = vmatpush1.bf16.msra.mxu0 %v344
    %364 = vmatprep.subr.bf16.mxu0 0
    %365 = vmatpush1.bf16.msra.mxu0 %v345
    %366 = vmatprep.subr.bf16.mxu0 0
    %367 = vmatpush1.bf16.msra.mxu0 %v346
    %368 = vmatprep.subr.bf16.mxu0 0
    %369 = vmatpush1.bf16.msra.mxu0 %v347
    %370 = vmatprep.subr.bf16.mxu0 0
    %371 = vmatpush1.bf16.msra.mxu0 %v348
    %372 = vmatprep.subr.bf16.mxu0 0
    %373 = vmatpush1.bf16.msra.mxu0 %v349
    %374 = vmatprep.subr.bf16.mxu0 0
    %375 = vmatpush1.bf16.msra.mxu0 0
    %376 = vmatprep.subr.bf16.mxu0 0
    %377 = vmatpush1.bf16.msra.mxu0 0
    %378 = vmatprep.subr.bf16.mxu0 0
    %379 = vmatpush1.bf16.msra.mxu0 0
    %380 = vmatprep.subr.bf16.mxu0 0
    %381 = vmatpush1.bf16.msra.mxu0 0
    %382 = vmatprep.subr.bf16.mxu0 0
    %383 = vmatpush1.bf16.msra.mxu0 0
    %384 = vmatprep.subr.bf16.mxu0 0
    %385 = vmatpush1.bf16.msra.mxu0 0
    %386 = vmatprep.subr.bf16.mxu0 0
    %387 = vmatpush1.bf16.msra.mxu0 0
    %388 = vmatprep.subr.bf16.mxu0 0
    %389 = vmatpush1.bf16.msra.mxu0 0
    %390 = vmatprep.mubr.bf16.mxu0 0
    %391 = vmatmul.mubr.bf16.gmra.mrb[0].mxu0 %v284
    %v392 = vpop.f32.mrb[0].mxu0
    %v393 = vadd.f32 %v308, %v392
    %v394 = vpop.f32.mrb[0].mxu0
    %v395 = vpop.f32.mrb[0].mxu0
    %v396 = vpop.f32.mrb[0].mxu0
    %397 = vdwg.mxu0
    %v398 = vmax.f32 %v393, 0.0
    %v399 = vpack.c.bf16 %v398, %v398
    %s400 = scalar_lea.vmem [#allocation5], 192
    %v401 = vld [vmem:[%s400] sm:$0xf]
    %v402 = vld [vmem:[%s400 + $0x4] sm:$0xf]
    %v403 = vld [vmem:[%s400 + $0x8] sm:$0xf]
    %v404 = vld [vmem:[%s400 + $0xc] sm:$0xf]
    %v405 = vld [vmem:[%s400 + $0x10] sm:$0xf]
    %v406 = vld [vmem:[%s400 + $0x14] sm:$0xf]
    %v407 = vld [vmem:[%s400 + $0x18] sm:$0xf]
    %v408 = vld [vmem:[%s400 + $0x1c] sm:$0xf]
    %v409 = vld [vmem:[%s400 + $0x20] sm:$0xf]
    %v410 = vld [vmem:[%s400 + $0x24] sm:$0xf]
    %v411 = vld [vmem:[%s400 + $0x28] sm:$0xf]
    %v412 = vld [vmem:[%s400 + $0x2c] sm:$0xf]
    %v413 = vld [vmem:[%s400 + $0x30] sm:$0xf]
    %v414 = vld [vmem:[%s400 + $0x34] sm:$0xf]
    %v415 = vld [vmem:[%s400 + $0x38] sm:$0xf]
    %v416 = vld [vmem:[%s400 + $0x3c] sm:$0xf]
    %s417 = scalar_lea.vmem [#allocation7], 3
    %v418 = vld [vmem:[%s417] sm:$0x1]
    %v420 = vlaneseq
    %v421 = vshrl.u32 %v420, 7
    %v422 = vsub.s32 0, %v421
    %v423 = vrot.slane %v418, %v422
    %v441 = vunpack.c.l.b16 %v401
    %v442 = vunpack.c.l.b16 %v402
    %v443 = vunpack.c.l.b16 %v403
    %v444 = vunpack.c.l.b16 %v404
    %v445 = vunpack.c.l.b16 %v405
    %v446 = vunpack.c.l.b16 %v406
    %v447 = vunpack.c.l.b16 %v407
    %v448 = vunpack.c.l.b16 %v408
    %v449 = vunpack.c.l.b16 %v409
    %v450 = vunpack.c.l.b16 %v410
    %v451 = vunpack.c.l.b16 %v411
    %v452 = vunpack.c.l.b16 %v412
    %v453 = vunpack.c.l.b16 %v413
    %v454 = vunpack.c.l.b16 %v414
    %v455 = vunpack.c.l.b16 %v415
    %v456 = vunpack.c.l.b16 %v416
    %v457 = vpack.c.b16 %v442, %v441
    %v458 = vpack.c.b16 %v444, %v443
    %v459 = vpack.c.b16 %v446, %v445
    %v460 = vpack.c.b16 %v448, %v447
    %v461 = vpack.c.b16 %v450, %v449
    %v462 = vpack.c.b16 %v452, %v451
    %v463 = vpack.c.b16 %v454, %v453
    %v464 = vpack.c.b16 %v456, %v455
    %473 = vmatprep.subr.bf16.mxu0 0
    %474 = vmatpush1.bf16.msra.mxu0 %v457
    %475 = vmatprep.subr.bf16.mxu0 0
    %476 = vmatpush1.bf16.msra.mxu0 %v458
    %477 = vmatprep.subr.bf16.mxu0 0
    %478 = vmatpush1.bf16.msra.mxu0 %v459
    %479 = vmatprep.subr.bf16.mxu0 0
    %480 = vmatpush1.bf16.msra.mxu0 %v460
    %481 = vmatprep.subr.bf16.mxu0 0
    %482 = vmatpush1.bf16.msra.mxu0 %v461
    %483 = vmatprep.subr.bf16.mxu0 0
    %484 = vmatpush1.bf16.msra.mxu0 %v462
    %485 = vmatprep.subr.bf16.mxu0 0
    %486 = vmatpush1.bf16.msra.mxu0 %v463
    %487 = vmatprep.subr.bf16.mxu0 0
    %488 = vmatpush1.bf16.msra.mxu0 %v464
    %489 = vmatprep.subr.bf16.mxu0 0
    %490 = vmatpush1.bf16.msra.mxu0 0
    %491 = vmatprep.subr.bf16.mxu0 0
    %492 = vmatpush1.bf16.msra.mxu0 0
    %493 = vmatprep.subr.bf16.mxu0 0
    %494 = vmatpush1.bf16.msra.mxu0 0
    %495 = vmatprep.subr.bf16.mxu0 0
    %496 = vmatpush1.bf16.msra.mxu0 0
    %497 = vmatprep.subr.bf16.mxu0 0
    %498 = vmatpush1.bf16.msra.mxu0 0
    %499 = vmatprep.subr.bf16.mxu0 0
    %500 = vmatpush1.bf16.msra.mxu0 0
    %501 = vmatprep.subr.bf16.mxu0 0
    %502 = vmatpush1.bf16.msra.mxu0 0
    %503 = vmatprep.subr.bf16.mxu0 0
    %504 = vmatpush1.bf16.msra.mxu0 0
    %505 = vmatprep.mubr.bf16.mxu0 0
    %506 = vmatmul.mubr.bf16.gmra.mrb[0].mxu0 %v399
    %v507 = vpop.f32.mrb[0].mxu0
    %v508 = vadd.f32 %v423, %v507
    %v509 = vpop.f32.mrb[0].mxu0
    %v510 = vpop.f32.mrb[0].mxu0
    %v511 = vpop.f32.mrb[0].mxu0
    %512 = vdwg.mxu0
    %v513 = vmax.f32 %v508, 0.0
    %v514 = vpack.c.bf16 %v513, %v513
    %s515 = scalar_lea.vmem [#allocation5], 256
    %v516 = vld [vmem:[%s515] sm:$0xf]
    %v517 = vld [vmem:[%s515 + $0x4] sm:$0xf]
    %v518 = vld [vmem:[%s515 + $0x8] sm:$0xf]
    %v519 = vld [vmem:[%s515 + $0xc] sm:$0xf]
    %v520 = vld [vmem:[%s515 + $0x10] sm:$0xf]
    %v521 = vld [vmem:[%s515 + $0x14] sm:$0xf]
    %v522 = vld [vmem:[%s515 + $0x18] sm:$0xf]
    %v523 = vld [vmem:[%s515 + $0x1c] sm:$0xf]
    %v524 = vld [vmem:[%s515 + $0x20] sm:$0xf]
    %v525 = vld [vmem:[%s515 + $0x24] sm:$0xf]
    %v526 = vld [vmem:[%s515 + $0x28] sm:$0xf]
    %v527 = vld [vmem:[%s515 + $0x2c] sm:$0xf]
    %v528 = vld [vmem:[%s515 + $0x30] sm:$0xf]
    %v529 = vld [vmem:[%s515 + $0x34] sm:$0xf]
    %v530 = vld [vmem:[%s515 + $0x38] sm:$0xf]
    %v531 = vld [vmem:[%s515 + $0x3c] sm:$0xf]
    %s532 = scalar_lea.vmem [#allocation7], 4
    %v533 = vld [vmem:[%s532] sm:$0x1]
    %v535 = vlaneseq
    %v536 = vshrl.u32 %v535, 7
    %v537 = vsub.s32 0, %v536
    %v538 = vrot.slane %v533, %v537
    %v556 = vunpack.c.l.b16 %v516
    %v557 = vunpack.c.l.b16 %v517
    %v558 = vunpack.c.l.b16 %v518
    %v559 = vunpack.c.l.b16 %v519
    %v560 = vunpack.c.l.b16 %v520
    %v561 = vunpack.c.l.b16 %v521
    %v562 = vunpack.c.l.b16 %v522
    %v563 = vunpack.c.l.b16 %v523
    %v564 = vunpack.c.l.b16 %v524
    %v565 = vunpack.c.l.b16 %v525
    %v566 = vunpack.c.l.b16 %v526
    %v567 = vunpack.c.l.b16 %v527
    %v568 = vunpack.c.l.b16 %v528
    %v569 = vunpack.c.l.b16 %v529
    %v570 = vunpack.c.l.b16 %v530
    %v571 = vunpack.c.l.b16 %v531
    %v572 = vpack.c.b16 %v557, %v556
    %v573 = vpack.c.b16 %v559, %v558
    %v574 = vpack.c.b16 %v561, %v560
    %v575 = vpack.c.b16 %v563, %v562
    %v576 = vpack.c.b16 %v565, %v564
    %v577 = vpack.c.b16 %v567, %v566
    %v578 = vpack.c.b16 %v569, %v568
    %v579 = vpack.c.b16 %v571, %v570
    %588 = vmatprep.subr.bf16.mxu0 0
    %589 = vmatpush1.bf16.msra.mxu0 %v572
    %590 = vmatprep.subr.bf16.mxu0 0
    %591 = vmatpush1.bf16.msra.mxu0 %v573
    %592 = vmatprep.subr.bf16.mxu0 0
    %593 = vmatpush1.bf16.msra.mxu0 %v574
    %594 = vmatprep.subr.bf16.mxu0 0
    %595 = vmatpush1.bf16.msra.mxu0 %v575
    %596 = vmatprep.subr.bf16.mxu0 0
    %597 = vmatpush1.bf16.msra.mxu0 %v576
    %598 = vmatprep.subr.bf16.mxu0 0
    %599 = vmatpush1.bf16.msra.mxu0 %v577
    %600 = vmatprep.subr.bf16.mxu0 0
    %601 = vmatpush1.bf16.msra.mxu0 %v578
    %602 = vmatprep.subr.bf16.mxu0 0
    %603 = vmatpush1.bf16.msra.mxu0 %v579
    %604 = vmatprep.subr.bf16.mxu0 0
    %605 = vmatpush1.bf16.msra.mxu0 0
    %606 = vmatprep.subr.bf16.mxu0 0
    %607 = vmatpush1.bf16.msra.mxu0 0
    %608 = vmatprep.subr.bf16.mxu0 0
    %609 = vmatpush1.bf16.msra.mxu0 0
    %610 = vmatprep.subr.bf16.mxu0 0
    %611 = vmatpush1.bf16.msra.mxu0 0
    %612 = vmatprep.subr.bf16.mxu0 0
    %613 = vmatpush1.bf16.msra.mxu0 0
    %614 = vmatprep.subr.bf16.mxu0 0
    %615 = vmatpush1.bf16.msra.mxu0 0
    %616 = vmatprep.subr.bf16.mxu0 0
    %617 = vmatpush1.bf16.msra.mxu0 0
    %618 = vmatprep.subr.bf16.mxu0 0
    %619 = vmatpush1.bf16.msra.mxu0 0
    %620 = vmatprep.mubr.bf16.mxu0 0
    %621 = vmatmul.mubr.bf16.gmra.mrb[0].mxu0 %v514
    %v622 = vpop.f32.mrb[0].mxu0
    %v623 = vadd.f32 %v538, %v622
    %v624 = vpop.f32.mrb[0].mxu0
    %v625 = vpop.f32.mrb[0].mxu0
    %v626 = vpop.f32.mrb[0].mxu0
    %627 = vdwg.mxu0
    %v628 = vmax.f32 %v623, 0.0
    %v629 = vpack.c.bf16 %v628, %v628
    %s630 = scalar_lea.vmem [#allocation5], 320
    %v631 = vld [vmem:[%s630] sm:$0xf]
    %v632 = vld [vmem:[%s630 + $0x4] sm:$0xf]
    %v633 = vld [vmem:[%s630 + $0x8] sm:$0xf]
    %v634 = vld [vmem:[%s630 + $0xc] sm:$0xf]
    %v635 = vld [vmem:[%s630 + $0x10] sm:$0xf]
    %v636 = vld [vmem:[%s630 + $0x14] sm:$0xf]
    %v637 = vld [vmem:[%s630 + $0x18] sm:$0xf]
    %v638 = vld [vmem:[%s630 + $0x1c] sm:$0xf]
    %v639 = vld [vmem:[%s630 + $0x20] sm:$0xf]
    %v640 = vld [vmem:[%s630 + $0x24] sm:$0xf]
    %v641 = vld [vmem:[%s630 + $0x28] sm:$0xf]
    %v642 = vld [vmem:[%s630 + $0x2c] sm:$0xf]
    %v643 = vld [vmem:[%s630 + $0x30] sm:$0xf]
    %v644 = vld [vmem:[%s630 + $0x34] sm:$0xf]
    %v645 = vld [vmem:[%s630 + $0x38] sm:$0xf]
    %v646 = vld [vmem:[%s630 + $0x3c] sm:$0xf]
    %s647 = scalar_lea.vmem [#allocation7], 5
    %v648 = vld [vmem:[%s647] sm:$0x1]
    %v650 = vlaneseq
    %v651 = vshrl.u32 %v650, 7
    %v652 = vsub.s32 0, %v651
    %v653 = vrot.slane %v648, %v652
    %v671 = vunpack.c.l.b16 %v631
    %v672 = vunpack.c.l.b16 %v632
    %v673 = vunpack.c.l.b16 %v633
    %v674 = vunpack.c.l.b16 %v634
    %v675 = vunpack.c.l.b16 %v635
    %v676 = vunpack.c.l.b16 %v636
    %v677 = vunpack.c.l.b16 %v637
    %v678 = vunpack.c.l.b16 %v638
    %v679 = vunpack.c.l.b16 %v639
    %v680 = vunpack.c.l.b16 %v640
    %v681 = vunpack.c.l.b16 %v641
    %v682 = vunpack.c.l.b16 %v642
    %v683 = vunpack.c.l.b16 %v643
    %v684 = vunpack.c.l.b16 %v644
    %v685 = vunpack.c.l.b16 %v645
    %v686 = vunpack.c.l.b16 %v646
    %v687 = vpack.c.b16 %v672, %v671
    %v688 = vpack.c.b16 %v674, %v673
    %v689 = vpack.c.b16 %v676, %v675
    %v690 = vpack.c.b16 %v678, %v677
    %v691 = vpack.c.b16 %v680, %v679
    %v692 = vpack.c.b16 %v682, %v681
    %v693 = vpack.c.b16 %v684, %v683
    %v694 = vpack.c.b16 %v686, %v685
    %703 = vmatprep.subr.bf16.mxu0 0
    %704 = vmatpush1.bf16.msra.mxu0 %v687
    %705 = vmatprep.subr.bf16.mxu0 0
    %706 = vmatpush1.bf16.msra.mxu0 %v688
    %707 = vmatprep.subr.bf16.mxu0 0
    %708 = vmatpush1.bf16.msra.mxu0 %v689
    %709 = vmatprep.subr.bf16.mxu0 0
    %710 = vmatpush1.bf16.msra.mxu0 %v690
    %711 = vmatprep.subr.bf16.mxu0 0
    %712 = vmatpush1.bf16.msra.mxu0 %v691
    %713 = vmatprep.subr.bf16.mxu0 0
    %714 = vmatpush1.bf16.msra.mxu0 %v692
    %715 = vmatprep.subr.bf16.mxu0 0
    %716 = vmatpush1.bf16.msra.mxu0 %v693
    %717 = vmatprep.subr.bf16.mxu0 0
    %718 = vmatpush1.bf16.msra.mxu0 %v694
    %719 = vmatprep.subr.bf16.mxu0 0
    %720 = vmatpush1.bf16.msra.mxu0 0
    %721 = vmatprep.subr.bf16.mxu0 0
    %722 = vmatpush1.bf16.msra.mxu0 0
    %723 = vmatprep.subr.bf16.mxu0 0
    %724 = vmatpush1.bf16.msra.mxu0 0
    %725 = vmatprep.subr.bf16.mxu0 0
    %726 = vmatpush1.bf16.msra.mxu0 0
    %727 = vmatprep.subr.bf16.mxu0 0
    %728 = vmatpush1.bf16.msra.mxu0 0
    %729 = vmatprep.subr.bf16.mxu0 0
    %730 = vmatpush1.bf16.msra.mxu0 0
    %731 = vmatprep.subr.bf16.mxu0 0
    %732 = vmatpush1.bf16.msra.mxu0 0
    %733 = vmatprep.subr.bf16.mxu0 0
    %734 = vmatpush1.bf16.msra.mxu0 0
    %735 = vmatprep.mubr.bf16.mxu0 0
    %736 = vmatmul.mubr.bf16.gmra.mrb[0].mxu0 %v629
    %v737 = vpop.f32.mrb[0].mxu0
    %v738 = vadd.f32 %v653, %v737
    %v739 = vpop.f32.mrb[0].mxu0
    %v740 = vpop.f32.mrb[0].mxu0
    %v741 = vpop.f32.mrb[0].mxu0
    %742 = vdwg.mxu0
    %v743 = vmax.f32 %v738, 0.0
    %v744 = vpack.c.bf16 %v743, %v743
    %s745 = scalar_lea.vmem [#allocation5], 384
    %v746 = vld [vmem:[%s745] sm:$0xf]
    %v747 = vld [vmem:[%s745 + $0x4] sm:$0xf]
    %v748 = vld [vmem:[%s745 + $0x8] sm:$0xf]
    %v749 = vld [vmem:[%s745 + $0xc] sm:$0xf]
    %v750 = vld [vmem:[%s745 + $0x10] sm:$0xf]
    %v751 = vld [vmem:[%s745 + $0x14] sm:$0xf]
    %v752 = vld [vmem:[%s745 + $0x18] sm:$0xf]
    %v753 = vld [vmem:[%s745 + $0x1c] sm:$0xf]
    %v754 = vld [vmem:[%s745 + $0x20] sm:$0xf]
    %v755 = vld [vmem:[%s745 + $0x24] sm:$0xf]
    %v756 = vld [vmem:[%s745 + $0x28] sm:$0xf]
    %v757 = vld [vmem:[%s745 + $0x2c] sm:$0xf]
    %v758 = vld [vmem:[%s745 + $0x30] sm:$0xf]
    %v759 = vld [vmem:[%s745 + $0x34] sm:$0xf]
    %v760 = vld [vmem:[%s745 + $0x38] sm:$0xf]
    %v761 = vld [vmem:[%s745 + $0x3c] sm:$0xf]
    %s762 = scalar_lea.vmem [#allocation7], 6
    %v763 = vld [vmem:[%s762] sm:$0x1]
    %v765 = vlaneseq
    %v766 = vshrl.u32 %v765, 7
    %v767 = vsub.s32 0, %v766
    %v768 = vrot.slane %v763, %v767
    %v786 = vunpack.c.l.b16 %v746
    %v787 = vunpack.c.l.b16 %v747
    %v788 = vunpack.c.l.b16 %v748
    %v789 = vunpack.c.l.b16 %v749
    %v790 = vunpack.c.l.b16 %v750
    %v791 = vunpack.c.l.b16 %v751
    %v792 = vunpack.c.l.b16 %v752
    %v793 = vunpack.c.l.b16 %v753
    %v794 = vunpack.c.l.b16 %v754
    %v795 = vunpack.c.l.b16 %v755
    %v796 = vunpack.c.l.b16 %v756
    %v797 = vunpack.c.l.b16 %v757
    %v798 = vunpack.c.l.b16 %v758
    %v799 = vunpack.c.l.b16 %v759
    %v800 = vunpack.c.l.b16 %v760
    %v801 = vunpack.c.l.b16 %v761
    %v802 = vpack.c.b16 %v787, %v786
    %v803 = vpack.c.b16 %v789, %v788
    %v804 = vpack.c.b16 %v791, %v790
    %v805 = vpack.c.b16 %v793, %v792
    %v806 = vpack.c.b16 %v795, %v794
    %v807 = vpack.c.b16 %v797, %v796
    %v808 = vpack.c.b16 %v799, %v798
    %v809 = vpack.c.b16 %v801, %v800
    %818 = vmatprep.subr.bf16.mxu0 0
    %819 = vmatpush1.bf16.msra.mxu0 %v802
    %820 = vmatprep.subr.bf16.mxu0 0
    %821 = vmatpush1.bf16.msra.mxu0 %v803
    %822 = vmatprep.subr.bf16.mxu0 0
    %823 = vmatpush1.bf16.msra.mxu0 %v804
    %824 = vmatprep.subr.bf16.mxu0 0
    %825 = vmatpush1.bf16.msra.mxu0 %v805
    %826 = vmatprep.subr.bf16.mxu0 0
    %827 = vmatpush1.bf16.msra.mxu0 %v806
    %828 = vmatprep.subr.bf16.mxu0 0
    %829 = vmatpush1.bf16.msra.mxu0 %v807
    %830 = vmatprep.subr.bf16.mxu0 0
    %831 = vmatpush1.bf16.msra.mxu0 %v808
    %832 = vmatprep.subr.bf16.mxu0 0
    %833 = vmatpush1.bf16.msra.mxu0 %v809
    %834 = vmatprep.subr.bf16.mxu0 0
    %835 = vmatpush1.bf16.msra.mxu0 0
    %836 = vmatprep.subr.bf16.mxu0 0
    %837 = vmatpush1.bf16.msra.mxu0 0
    %838 = vmatprep.subr.bf16.mxu0 0
    %839 = vmatpush1.bf16.msra.mxu0 0
    %840 = vmatprep.subr.bf16.mxu0 0
    %841 = vmatpush1.bf16.msra.mxu0 0
    %842 = vmatprep.subr.bf16.mxu0 0
    %843 = vmatpush1.bf16.msra.mxu0 0
    %844 = vmatprep.subr.bf16.mxu0 0
    %845 = vmatpush1.bf16.msra.mxu0 0
    %846 = vmatprep.subr.bf16.mxu0 0
    %847 = vmatpush1.bf16.msra.mxu0 0
    %848 = vmatprep.subr.bf16.mxu0 0
    %849 = vmatpush1.bf16.msra.mxu0 0
    %850 = vmatprep.mubr.bf16.mxu0 0
    %851 = vmatmul.mubr.bf16.gmra.mrb[0].mxu0 %v744
    %v852 = vpop.f32.mrb[0].mxu0
    %v853 = vadd.f32 %v768, %v852
    %v854 = vpop.f32.mrb[0].mxu0
    %v855 = vpop.f32.mrb[0].mxu0
    %v856 = vpop.f32.mrb[0].mxu0
    %857 = vdwg.mxu0
    %v858 = vmax.f32 %v853, 0.0
    %v859 = vpack.c.bf16 %v858, %v858
    %s860 = scalar_lea.vmem [#allocation5], 448
    %v861 = vld [vmem:[%s860] sm:$0xf]
    %v862 = vld [vmem:[%s860 + $0x4] sm:$0xf]
    %v863 = vld [vmem:[%s860 + $0x8] sm:$0xf]
    %v864 = vld [vmem:[%s860 + $0xc] sm:$0xf]
    %v865 = vld [vmem:[%s860 + $0x10] sm:$0xf]
    %v866 = vld [vmem:[%s860 + $0x14] sm:$0xf]
    %v867 = vld [vmem:[%s860 + $0x18] sm:$0xf]
    %v868 = vld [vmem:[%s860 + $0x1c] sm:$0xf]
    %v869 = vld [vmem:[%s860 + $0x20] sm:$0xf]
    %v870 = vld [vmem:[%s860 + $0x24] sm:$0xf]
    %v871 = vld [vmem:[%s860 + $0x28] sm:$0xf]
    %v872 = vld [vmem:[%s860 + $0x2c] sm:$0xf]
    %v873 = vld [vmem:[%s860 + $0x30] sm:$0xf]
    %v874 = vld [vmem:[%s860 + $0x34] sm:$0xf]
    %v875 = vld [vmem:[%s860 + $0x38] sm:$0xf]
    %v876 = vld [vmem:[%s860 + $0x3c] sm:$0xf]
    %s877 = scalar_lea.vmem [#allocation7], 7
    %v878 = vld [vmem:[%s877] sm:$0x1]
    %v880 = vlaneseq
    %v881 = vshrl.u32 %v880, 7
    %v882 = vsub.s32 0, %v881
    %v883 = vrot.slane %v878, %v882
    %v901 = vunpack.c.l.b16 %v861
    %v902 = vunpack.c.l.b16 %v862
    %v903 = vunpack.c.l.b16 %v863
    %v904 = vunpack.c.l.b16 %v864
    %v905 = vunpack.c.l.b16 %v865
    %v906 = vunpack.c.l.b16 %v866
    %v907 = vunpack.c.l.b16 %v867
    %v908 = vunpack.c.l.b16 %v868
    %v909 = vunpack.c.l.b16 %v869
    %v910 = vunpack.c.l.b16 %v870
    %v911 = vunpack.c.l.b16 %v871
    %v912 = vunpack.c.l.b16 %v872
    %v913 = vunpack.c.l.b16 %v873
    %v914 = vunpack.c.l.b16 %v874
    %v915 = vunpack.c.l.b16 %v875
    %v916 = vunpack.c.l.b16 %v876
    %v917 = vpack.c.b16 %v902, %v901
    %v918 = vpack.c.b16 %v904, %v903
    %v919 = vpack.c.b16 %v906, %v905
    %v920 = vpack.c.b16 %v908, %v907
    %v921 = vpack.c.b16 %v910, %v909
    %v922 = vpack.c.b16 %v912, %v911
    %v923 = vpack.c.b16 %v914, %v913
    %v924 = vpack.c.b16 %v916, %v915
    %933 = vmatprep.subr.bf16.mxu0 0
    %934 = vmatpush1.bf16.msra.mxu0 %v917
    %935 = vmatprep.subr.bf16.mxu0 0
    %936 = vmatpush1.bf16.msra.mxu0 %v918
    %937 = vmatprep.subr.bf16.mxu0 0
    %938 = vmatpush1.bf16.msra.mxu0 %v919
    %939 = vmatprep.subr.bf16.mxu0 0
    %940 = vmatpush1.bf16.msra.mxu0 %v920
    %941 = vmatprep.subr.bf16.mxu0 0
    %942 = vmatpush1.bf16.msra.mxu0 %v921
    %943 = vmatprep.subr.bf16.mxu0 0
    %944 = vmatpush1.bf16.msra.mxu0 %v922
    %945 = vmatprep.subr.bf16.mxu0 0
    %946 = vmatpush1.bf16.msra.mxu0 %v923
    %947 = vmatprep.subr.bf16.mxu0 0
    %948 = vmatpush1.bf16.msra.mxu0 %v924
    %949 = vmatprep.subr.bf16.mxu0 0
    %950 = vmatpush1.bf16.msra.mxu0 0
    %951 = vmatprep.subr.bf16.mxu0 0
    %952 = vmatpush1.bf16.msra.mxu0 0
    %953 = vmatprep.subr.bf16.mxu0 0
    %954 = vmatpush1.bf16.msra.mxu0 0
    %955 = vmatprep.subr.bf16.mxu0 0
    %956 = vmatpush1.bf16.msra.mxu0 0
    %957 = vmatprep.subr.bf16.mxu0 0
    %958 = vmatpush1.bf16.msra.mxu0 0
    %959 = vmatprep.subr.bf16.mxu0 0
    %960 = vmatpush1.bf16.msra.mxu0 0
    %961 = vmatprep.subr.bf16.mxu0 0
    %962 = vmatpush1.bf16.msra.mxu0 0
    %963 = vmatprep.subr.bf16.mxu0 0
    %964 = vmatpush1.bf16.msra.mxu0 0
    %965 = vmatprep.mubr.bf16.mxu0 0
    %966 = vmatmul.mubr.bf16.gmra.mrb[0].mxu0 %v859
    %v967 = vpop.f32.mrb[0].mxu0
    %v968 = vadd.f32 %v883, %v967
    %v969 = vpop.f32.mrb[0].mxu0
    %v970 = vpop.f32.mrb[0].mxu0
    %v971 = vpop.f32.mrb[0].mxu0
    %972 = vdwg.mxu0
    %v973 = vmax.f32 %v968, 0.0
    %v974 = vpack.c.bf16 %v973, %v973
    %s975 = scalar_lea.vmem [#allocation5], 512
    %v976 = vld [vmem:[%s975] sm:$0xf]
    %v977 = vld [vmem:[%s975 + $0x4] sm:$0xf]
    %v978 = vld [vmem:[%s975 + $0x8] sm:$0xf]
    %v979 = vld [vmem:[%s975 + $0xc] sm:$0xf]
    %v980 = vld [vmem:[%s975 + $0x10] sm:$0xf]
    %v981 = vld [vmem:[%s975 + $0x14] sm:$0xf]
    %v982 = vld [vmem:[%s975 + $0x18] sm:$0xf]
    %v983 = vld [vmem:[%s975 + $0x1c] sm:$0xf]
    %v984 = vld [vmem:[%s975 + $0x20] sm:$0xf]
    %v985 = vld [vmem:[%s975 + $0x24] sm:$0xf]
    %v986 = vld [vmem:[%s975 + $0x28] sm:$0xf]
    %v987 = vld [vmem:[%s975 + $0x2c] sm:$0xf]
    %v988 = vld [vmem:[%s975 + $0x30] sm:$0xf]
    %v989 = vld [vmem:[%s975 + $0x34] sm:$0xf]
    %v990 = vld [vmem:[%s975 + $0x38] sm:$0xf]
    %v991 = vld [vmem:[%s975 + $0x3c] sm:$0xf]
    %s992 = scalar_lea.vmem [#allocation7], 8
    %v993 = vld [vmem:[%s992] sm:$0x1]
    %v995 = vlaneseq
    %v996 = vshrl.u32 %v995, 7
    %v997 = vsub.s32 0, %v996
    %v998 = vrot.slane %v993, %v997
    %v1016 = vunpack.c.l.b16 %v976
    %v1017 = vunpack.c.l.b16 %v977
    %v1018 = vunpack.c.l.b16 %v978
    %v1019 = vunpack.c.l.b16 %v979
    %v1020 = vunpack.c.l.b16 %v980
    %v1021 = vunpack.c.l.b16 %v981
    %v1022 = vunpack.c.l.b16 %v982
    %v1023 = vunpack.c.l.b16 %v983
    %v1024 = vunpack.c.l.b16 %v984
    %v1025 = vunpack.c.l.b16 %v985
    %v1026 = vunpack.c.l.b16 %v986
    %v1027 = vunpack.c.l.b16 %v987
    %v1028 = vunpack.c.l.b16 %v988
    %v1029 = vunpack.c.l.b16 %v989
    %v1030 = vunpack.c.l.b16 %v990
    %v1031 = vunpack.c.l.b16 %v991
    %v1032 = vpack.c.b16 %v1017, %v1016
    %v1033 = vpack.c.b16 %v1019, %v1018
    %v1034 = vpack.c.b16 %v1021, %v1020
    %v1035 = vpack.c.b16 %v1023, %v1022
    %v1036 = vpack.c.b16 %v1025, %v1024
    %v1037 = vpack.c.b16 %v1027, %v1026
    %v1038 = vpack.c.b16 %v1029, %v1028
    %v1039 = vpack.c.b16 %v1031, %v1030
    %1048 = vmatprep.subr.bf16.mxu0 0
    %1049 = vmatpush1.bf16.msra.mxu0 %v1032
    %1050 = vmatprep.subr.bf16.mxu0 0
    %1051 = vmatpush1.bf16.msra.mxu0 %v1033
    %1052 = vmatprep.subr.bf16.mxu0 0
    %1053 = vmatpush1.bf16.msra.mxu0 %v1034
    %1054 = vmatprep.subr.bf16.mxu0 0
    %1055 = vmatpush1.bf16.msra.mxu0 %v1035
    %1056 = vmatprep.subr.bf16.mxu0 0
    %1057 = vmatpush1.bf16.msra.mxu0 %v1036
    %1058 = vmatprep.subr.bf16.mxu0 0
    %1059 = vmatpush1.bf16.msra.mxu0 %v1037
    %1060 = vmatprep.subr.bf16.mxu0 0
    %1061 = vmatpush1.bf16.msra.mxu0 %v1038
    %1062 = vmatprep.subr.bf16.mxu0 0
    %1063 = vmatpush1.bf16.msra.mxu0 %v1039
    %1064 = vmatprep.subr.bf16.mxu0 0
    %1065 = vmatpush1.bf16.msra.mxu0 0
    %1066 = vmatprep.subr.bf16.mxu0 0
    %1067 = vmatpush1.bf16.msra.mxu0 0
    %1068 = vmatprep.subr.bf16.mxu0 0
    %1069 = vmatpush1.bf16.msra.mxu0 0
    %1070 = vmatprep.subr.bf16.mxu0 0
    %1071 = vmatpush1.bf16.msra.mxu0 0
    %1072 = vmatprep.subr.bf16.mxu0 0
    %1073 = vmatpush1.bf16.msra.mxu0 0
    %1074 = vmatprep.subr.bf16.mxu0 0
    %1075 = vmatpush1.bf16.msra.mxu0 0
    %1076 = vmatprep.subr.bf16.mxu0 0
    %1077 = vmatpush1.bf16.msra.mxu0 0
    %1078 = vmatprep.subr.bf16.mxu0 0
    %1079 = vmatpush1.bf16.msra.mxu0 0
    %1080 = vmatprep.mubr.bf16.mxu0 0
    %1081 = vmatmul.mubr.bf16.gmra.mrb[0].mxu0 %v974
    %v1082 = vpop.f32.mrb[0].mxu0
    %v1083 = vadd.f32 %v998, %v1082
    %v1084 = vpop.f32.mrb[0].mxu0
    %v1085 = vpop.f32.mrb[0].mxu0
    %v1086 = vpop.f32.mrb[0].mxu0
    %1087 = vdwg.mxu0
    %v1088 = vmax.f32 %v1083, 0.0
    %1089 = vst [vmem:[#allocation8] sm:$0xff] %v1088
    // Predicated region
    $region26: #{tpu_custom_call.1} parent=1 // pred_check
      _
    $region27: #{tpu_custom_call.1} parent=1 // pred_check_branch
      %1091 = sbr.rel (0) target = $region29
    $region28: #{tpu_custom_call.1} parent=1 // pred_region
      %s1093 = ssub.s32 128, 128
      %1094 = vsyncadd [#allocation4], %s1093
      %s1096 = sshll.u32 [#allocation8], 4
      %s1097 = int_to_ptr.vmem [resolvable:$true] %s1096
      %1099 = dma.vmem_to_hbm [thread:$0]  %s1097, 128, %s3, [#allocation4]
    $region29: #{tpu_custom_call.1} parent=1 // pred_fallthru
      _
    // Predicated region
    $region30: #{tpu_custom_call.1} parent=1 // pred_check
      _
    $region31: #{tpu_custom_call.1} parent=1 // pred_check_branch
      %1101 = sbr.rel (0) target = $region33
    $region32: #{tpu_custom_call.1} parent=1 // pred_region
      %1102 = dma.done [#allocation4], 128
    $region33: #{tpu_custom_call.1} parent=1 // pred_fallthru
      _
    %1103 = vsyncpa [#allocation3], 1
    %1104 = vsyncpa [#allocation6], 1
    %1105 = vsyncpa [#allocation4], 1

</llo_original>
